<compile_context>
chip_gen: v7x
topology: tpu7x:2x2x1
jax: 0.10.0
libtpu: 0.0.40
codegen_flags: <defaults>
</compile_context>

<pallas_src>
import math
import numpy as np
import jax
import jax.numpy as jnp
from jax.experimental import pallas as pl
from jax.experimental.pallas import tpu as pltpu

SCALES = [0.5, 0.25]  # module config: all > 0, original scale (1) excluded


def _pt_bilinear_matrix(in_size, out_size, scale):
    """Interpolation matrix matching F.interpolate(mode='bilinear', align_corners=False)
    with an explicit scale_factor: src = (dst + 0.5) / scale - 0.5, clamped at 0."""
    dst = np.arange(out_size, dtype=np.float64)
    src = np.maximum((dst + 0.5) / scale - 0.5, 0.0)
    i0 = np.minimum(np.floor(src).astype(np.int64), in_size - 1)
    i1 = np.minimum(i0 + 1, in_size - 1)
    lam1 = (src - i0).astype(np.float32)
    lam0 = 1.0 - lam1
    W = np.zeros((out_size, in_size), dtype=np.float32)
    W[np.arange(out_size), i0] += lam0
    W[np.arange(out_size), i1] += lam1
    return W


def _make_kernel(C, H, W, scale_meta, n_scales):
    """scale_meta: list of (row_offset, padded_rows, Ho, Wo) per scale."""
    base_coef = 1.0 / float(C * H * W * n_scales)

    def kernel(pred_ref, tgt_ref, wy_ref, *rest):
        wx_refs, out_ref = rest[:-1], rest[-1]

        d = pred_ref[0] - tgt_ref[0]                                # [H, C*W]
        # base (unscaled) MSE term
        loss = jnp.sum(d * d) * base_coef

        # stage 1: all scales' row interpolation in one matmul
        t = jnp.dot(wy_ref[...], d,
                    preferred_element_type=jnp.float32)             # [Hp_tot, C*W]

        # stage 2: one lane-dense matmul per scale (channel-block-diagonal Wx^T)
        for si, (off, hp, ho, wo) in enumerate(scale_meta):
            ts = t[off:off + hp]                                    # [Hp_s, C*W] (aligned static slice)
            r = jnp.dot(ts, wx_refs[si][...],
                        preferred_element_type=jnp.float32)         # [Hp_s, 128*k]
            loss = loss + jnp.sum(r * r) * (1.0 / float(C * ho * wo * n_scales))

        # lane-dense per-b output block; wrapper reads [b, 0, 0]
        out_ref[...] = jnp.full((1, 8, 128), loss, dtype=out_ref.dtype)

    return kernel


def multi_scale_loss(pred, target, scales=SCALES):
    if pred.ndim != 4:
        pred = pred[:, None]
    if target.ndim != 4:
        target = target[:, None]
    pred = pred.astype(jnp.float32)
    target = target.astype(jnp.float32)
    B, C, H, W = pred.shape
    CW = C * W

    # host-side layout plumbing: NCHW -> [B, H, C*W]
    pred2 = jnp.transpose(pred, (0, 2, 1, 3)).reshape(B, H, CW)
    tgt2 = jnp.transpose(target, (0, 2, 1, 3)).reshape(B, H, CW)

    wy_blocks, wx_mats, scale_meta = [], [], []
    off = 0
    for s in scales:
        Ho, Wo = int(math.floor(H * s)), int(math.floor(W * s))
        # stage-1 rows, zero-padded to a sublane multiple of 8 (aligned static slices)
        Hp = max(8, ((Ho + 7) // 8) * 8)
        wy = _pt_bilinear_matrix(H, Ho, s)                          # [Ho, H]
        wy_pad = np.zeros((Hp, H), dtype=np.float32)
        wy_pad[:Ho] = wy
        wy_blocks.append(wy_pad)

        # stage-2: pre-transposed Wx, block-diagonal over channels, lane-dense columns
        wx = _pt_bilinear_matrix(W, Wo, s)                          # [Wo, W]
        Np = max(128, ((C * Wo + 127) // 128) * 128)
        blk = np.zeros((CW, Np), dtype=np.float32)
        for c in range(C):
            blk[c * W:(c + 1) * W, c * Wo:(c + 1) * Wo] = wx.T
        wx_mats.append(jnp.asarray(blk))

        scale_meta.append((off, Hp, Ho, Wo))
        off += Hp
    wy_stacked = jnp.asarray(np.concatenate(wy_blocks, axis=0))     # [Hp_tot, H]

    kernel = _make_kernel(C, H, W, scale_meta, len(scales))

    in_specs = [
        pl.BlockSpec((1, H, CW), lambda b: (b, 0, 0)),
        pl.BlockSpec((1, H, CW), lambda b: (b, 0, 0)),
        pl.BlockSpec(wy_stacked.shape, lambda b: (0, 0)),
    ]
    for m in wx_mats:
        in_specs.append(pl.BlockSpec(m.shape, lambda b: (0, 0)))

    out = pl.pallas_call(
        kernel,
        out_shape=jax.ShapeDtypeStruct((B, 8, 128), jnp.float32),
        grid=(B,),
        in_specs=in_specs,
        out_specs=pl.BlockSpec((1, 8, 128), lambda b: (b, 0, 0)),
        compiler_params=pltpu.CompilerParams(dimension_semantics=("parallel",)),
    )(pred2, tgt2, wy_stacked, *wx_mats)
    return out[:, 0, 0]


def _reference(pred, target, scales=SCALES):
    """Plain-JAX reference using the same interpolation matrices."""
    d = (pred - target).astype(jnp.float32)
    B, C, H, W = d.shape
    total = jnp.mean(d * d, axis=(1, 2, 3))
    for s in scales:
        Ho, Wo = int(math.floor(H * s)), int(math.floor(W * s))
        Wy = jnp.asarray(_pt_bilinear_matrix(H, Ho, s))
        Wx = jnp.asarray(_pt_bilinear_matrix(W, Wo, s))
        ds = jnp.einsum('oh,bchw,pw->bcop', Wy, d, Wx)
        total = total + jnp.mean(ds * ds, axis=(1, 2, 3))
    return total / float(len(scales))


if __name__ == "__main__":
    key = jax.random.PRNGKey(0)
    k1, k2 = jax.random.split(key)
    B, C, H, W = 2, 4, 16, 16
    prediction = jax.random.normal(k1, (B, C, H, W), dtype=jnp.float32)
    target = jax.random.normal(k2, (B, C, H, W), dtype=jnp.float32)

    loss = multi_scale_loss(prediction, target)
    loss = jax.block_until_ready(loss)

    ref = jax.block_until_ready(_reference(prediction, target))
    assert loss.shape == (B,), loss.shape
    np.testing.assert_allclose(np.asarray(loss), np.asarray(ref), rtol=1e-5, atol=1e-5)

    print("KERNEL_OK")
</pallas_src>

<mosaic_0001>
module attributes {stable_mosaic.version = 11 : i64} {
  func.func @kernel(%arg0: i32, %arg1: memref<1x16x64xf32, #tpu.memory_space<vmem>>, %arg2: memref<1x16x64xf32, #tpu.memory_space<vmem>>, %arg3: memref<16x16xf32, #tpu.memory_space<vmem>>, %arg4: memref<64x128xf32, #tpu.memory_space<vmem>>, %arg5: memref<64x128xf32, #tpu.memory_space<vmem>>, %arg6: memref<1x8x128xf32, #tpu.memory_space<vmem>>) attributes {dimension_semantics = [#tpu.dimension_semantics<parallel>], iteration_bounds = array<i64: 2>, scalar_prefetch = 0 : i64, scratch_operands = 0 : i64, tpu.core_type = #tpu.core_type<tc>, window_params = [{transform_indices = @transform_0, window_bounds = array<i64: 1, 16, 64>}, {transform_indices = @transform_1, window_bounds = array<i64: 1, 16, 64>}, {pipeline_mode = #tpu.pipeline_mode<synchronous>, transform_indices = @transform_2, window_bounds = array<i64: 16, 16>}, {pipeline_mode = #tpu.pipeline_mode<synchronous>, transform_indices = @transform_3, window_bounds = array<i64: 64, 128>}, {pipeline_mode = #tpu.pipeline_mode<synchronous>, transform_indices = @transform_4, window_bounds = array<i64: 64, 128>}, {transform_indices = @transform_5, window_bounds = array<i64: 1, 8, 128>}]} {
    %c0 = arith.constant 0 : index
    %c0_0 = arith.constant 0 : index
    %c0_1 = arith.constant 0 : index
    %0 = vector.load %arg1[%c0, %c0_0, %c0_1] : memref<1x16x64xf32, #tpu.memory_space<vmem>>, vector<1x16x64xf32>
    %1 = vector.shape_cast %0 : vector<1x16x64xf32> to vector<16x64xf32>
    %c0_2 = arith.constant 0 : index
    %c0_3 = arith.constant 0 : index
    %c0_4 = arith.constant 0 : index
    %2 = vector.load %arg2[%c0_2, %c0_3, %c0_4] : memref<1x16x64xf32, #tpu.memory_space<vmem>>, vector<1x16x64xf32>
    %3 = vector.shape_cast %2 : vector<1x16x64xf32> to vector<16x64xf32>
    %4 = arith.subf %1, %3 : vector<16x64xf32>
    %5 = arith.mulf %4, %4 : vector<16x64xf32>
    %6 = vector.shape_cast %5 : vector<16x64xf32> to vector<1x16x64xf32>
    %cst = arith.constant dense<0.000000e+00> : vector<1xf32>
    %7 = vector.multi_reduction <add>, %6, %cst [1, 2] : vector<1x16x64xf32> to vector<1xf32>
    %8 = vector.shape_cast %7 : vector<1xf32> to vector<1x1x1xf32>
    %9 = vector.extract %8[0, 0, 0] : f32 from vector<1x1x1xf32>
    %cst_5 = arith.constant 4.8828125E-4 : f32
    %10 = arith.mulf %9, %cst_5 : f32
    %c0_6 = arith.constant 0 : index
    %c0_7 = arith.constant 0 : index
    %11 = vector.load %arg3[%c0_6, %c0_7] : memref<16x16xf32, #tpu.memory_space<vmem>>, vector<16x16xf32>
    %cst_8 = arith.constant dense<0.000000e+00> : vector<16x64xf32>
    %12 = tpu.matmul %11, %4, %cst_8 {dimension_numbers = #tpu.dot_dimension_numbers<[1], [0], [0], [1], [0, 0, 1, 1], [], []>} : vector<16x16xf32>, vector<16x64xf32>, vector<16x64xf32> -> vector<16x64xf32>
    %13 = vector.extract_strided_slice %12 {offsets = [0, 0], sizes = [8, 64], strides = [1, 1]} : vector<16x64xf32> to vector<8x64xf32>
    %c0_9 = arith.constant 0 : index
    %c0_10 = arith.constant 0 : index
    %14 = vector.load %arg4[%c0_9, %c0_10] : memref<64x128xf32, #tpu.memory_space<vmem>>, vector<64x128xf32>
    %cst_11 = arith.constant dense<0.000000e+00> : vector<8x128xf32>
    %15 = tpu.matmul %13, %14, %cst_11 {dimension_numbers = #tpu.dot_dimension_numbers<[1], [0], [0], [1], [0, 0, 1, 1], [], []>} : vector<8x64xf32>, vector<64x128xf32>, vector<8x128xf32> -> vector<8x128xf32>
    %16 = arith.mulf %15, %15 : vector<8x128xf32>
    %17 = vector.shape_cast %16 : vector<8x128xf32> to vector<1x8x128xf32>
    %cst_12 = arith.constant dense<0.000000e+00> : vector<1xf32>
    %18 = vector.multi_reduction <add>, %17, %cst_12 [1, 2] : vector<1x8x128xf32> to vector<1xf32>
    %19 = vector.shape_cast %18 : vector<1xf32> to vector<1x1x1xf32>
    %20 = vector.extract %19[0, 0, 0] : f32 from vector<1x1x1xf32>
    %cst_13 = arith.constant 0.001953125 : f32
    %21 = arith.mulf %20, %cst_13 : f32
    %22 = arith.addf %10, %21 : f32
    %23 = vector.extract_strided_slice %12 {offsets = [8, 0], sizes = [8, 64], strides = [1, 1]} : vector<16x64xf32> to vector<8x64xf32>
    %c0_14 = arith.constant 0 : index
    %c0_15 = arith.constant 0 : index
    %24 = vector.load %arg5[%c0_14, %c0_15] : memref<64x128xf32, #tpu.memory_space<vmem>>, vector<64x128xf32>
    %cst_16 = arith.constant dense<0.000000e+00> : vector<8x128xf32>
    %25 = tpu.matmul %23, %24, %cst_16 {dimension_numbers = #tpu.dot_dimension_numbers<[1], [0], [0], [1], [0, 0, 1, 1], [], []>} : vector<8x64xf32>, vector<64x128xf32>, vector<8x128xf32> -> vector<8x128xf32>
    %26 = arith.mulf %25, %25 : vector<8x128xf32>
    %27 = vector.shape_cast %26 : vector<8x128xf32> to vector<1x8x128xf32>
    %cst_17 = arith.constant dense<0.000000e+00> : vector<1xf32>
    %28 = vector.multi_reduction <add>, %27, %cst_17 [1, 2] : vector<1x8x128xf32> to vector<1xf32>
    %29 = vector.shape_cast %28 : vector<1xf32> to vector<1x1x1xf32>
    %30 = vector.extract %29[0, 0, 0] : f32 from vector<1x1x1xf32>
    %cst_18 = arith.constant 7.812500e-03 : f32
    %31 = arith.mulf %30, %cst_18 : f32
    %32 = arith.addf %22, %31 : f32
    %33 = vector.broadcast %32 : f32 to vector<1x8x128xf32>
    %c0_19 = arith.constant 0 : index
    %c0_20 = arith.constant 0 : index
    %c0_21 = arith.constant 0 : index
    %34 = vector.load %arg6[%c0_19, %c0_20, %c0_21] : memref<1x8x128xf32, #tpu.memory_space<vmem>>, vector<1x8x128xf32>
    tpu.vector_store %arg6[%c0_19, %c0_20, %c0_21], %33 {strides = array<i32>} : memref<1x8x128xf32, #tpu.memory_space<vmem>>, vector<1x8x128xf32>,
    return
  }
  func.func @transform_0(%arg0: i32) -> (i32, i32, i32) {
    %c0_i32 = arith.constant 0 : i32
    %c0_i32_0 = arith.constant 0 : i32
    %c0_i32_1 = arith.constant 0 : i32
    return %arg0, %c0_i32, %c0_i32_0 : i32, i32, i32
  }
  func.func @transform_1(%arg0: i32) -> (i32, i32, i32) {
    %c0_i32 = arith.constant 0 : i32
    %c0_i32_0 = arith.constant 0 : i32
    %c0_i32_1 = arith.constant 0 : i32
    return %arg0, %c0_i32, %c0_i32_0 : i32, i32, i32
  }
  func.func @transform_2(%arg0: i32) -> (i32, i32) {
    %c0_i32 = arith.constant 0 : i32
    %c0_i32_0 = arith.constant 0 : i32
    %c0_i32_1 = arith.constant 0 : i32
    return %c0_i32, %c0_i32_0 : i32, i32
  }
  func.func @transform_3(%arg0: i32) -> (i32, i32) {
    %c0_i32 = arith.constant 0 : i32
    %c0_i32_0 = arith.constant 0 : i32
    %c0_i32_1 = arith.constant 0 : i32
    return %c0_i32, %c0_i32_0 : i32, i32
  }
  func.func @transform_4(%arg0: i32) -> (i32, i32) {
    %c0_i32 = arith.constant 0 : i32
    %c0_i32_0 = arith.constant 0 : i32
    %c0_i32_1 = arith.constant 0 : i32
    return %c0_i32, %c0_i32_0 : i32, i32
  }
  func.func @transform_5(%arg0: i32) -> (i32, i32, i32) {
    %c0_i32 = arith.constant 0 : i32
    %c0_i32_0 = arith.constant 0 : i32
    %c0_i32_1 = arith.constant 0 : i32
    return %arg0, %c0_i32, %c0_i32_0 : i32, i32, i32
  }
}

</mosaic_0001>

<llo_original>
// kernel: tpu_custom_call.1
$region0: #{tpu_custom_call.1}
  #allocation0 [shape = 'u32[]', space=smem, size = 0x4, offset = 0x4, fixed_abs, tag = 'smem constant byte address 0x4 - core index']
  #allocation1 [shape = 'u32[144,128]{1,0:T(1,128)}', space=vmem, size = 0x12000, scoped, tag = 'internal scratch']
  %s0 = inlined_call_operand.hbm [shape: f32[2,16,64], index: 0, kind: input, shape index: {}]
  %s1 = inlined_call_operand.hbm [shape: f32[2,16,64], index: 1, kind: input, shape index: {}]
  %s2 = inlined_call_operand.hbm [shape: f32[16,16], index: 2, kind: input, shape index: {}]
  %s3 = inlined_call_operand.hbm [shape: f32[64,128], index: 3, kind: input, shape index: {}]
  %s4 = inlined_call_operand.hbm [shape: f32[64,128], index: 4, kind: input, shape index: {}]
  %s5 = inlined_call_operand.hbm [shape: f32[2,8,128], index: 5, kind: output, shape index: {}]
  %s6 = sld [smem:[#allocation0]]
  $region73: #{tpu_custom_call.1} parent=0
    _
  %s8 = ssub.s32 1, %s6
  %s9 = scalar_select 0, %s8, %s6
  $region1: #{tpu_custom_call.1} parent=0
    #allocation2 [shape = 'u8[16384]{0}', space=vmem, size = 0x4000, scoped, tag = 'input window, operand 0']
    #allocation3 [shape = 's32[2]{0}', space=sflag, size = 0x8, scoped, tag = 'scoped memory for tpu_custom_call.1']
    #allocation4 [shape = 's32[2]{0}', space=sflag, size = 0x8, scoped, tag = 'scoped memory for tpu_custom_call.1']
    #allocation5 [shape = 'u8[16384]{0}', space=vmem, size = 0x4000, scoped, tag = 'input window, operand 1']
    #allocation6 [shape = 's32[2]{0}', space=sflag, size = 0x8, scoped, tag = 'scoped memory for tpu_custom_call.1']
    #allocation7 [shape = 'u8[8192]{0}', space=vmem, size = 0x2000, scoped, tag = 'input window, operand 2, single buffered']
    #allocation8 [shape = 'u8[32768]{0}', space=vmem, size = 0x8000, scoped, tag = 'input window, operand 3, single buffered']
    #allocation9 [shape = 's32[1]{0}', space=sflag, size = 0x4, scoped, tag = 'scoped memory for tpu_custom_call.1']
    #allocation10 [shape = 'u8[32768]{0}', space=vmem, size = 0x8000, scoped, tag = 'input window, operand 4, single buffered']
    #allocation11 [shape = 'u8[8192]{0}', space=vmem, size = 0x2000, scoped, tag = 'output window, operand 0']
    %10 = vsyncpa [#allocation3], 0
    %s11 = scalar_lea.sflag [#allocation3], 1
    %12 = vsyncpa %s11, 0
    %13 = vsyncpa [#allocation6], 0
    %s14 = scalar_lea.sflag [#allocation6], 1
    %15 = vsyncpa %s14, 0
    %16 = vsyncpa [#allocation9], 0
    %17 = vsyncpa [#allocation4], 0
    %s18 = scalar_lea.sflag [#allocation4], 1
    %19 = vsyncpa %s18, 0
    loop: start=0, step=1, limit=4
    $region2: #{tpu_custom_call.1} parent=1 // loop_pre_header
      _
    $region3: #{tpu_custom_call.1} parent=1 // loop_header
      %s21 = sphi 0, %s25
      %p22 = scmp.ge.s32.totalorder %s21, 4
      %s31 = sphi 0, %s33
      %s34 = sphi 0, %s31
      %s35 = sphi 0, %s34
      %s51 = sphi 0, %s35
      %s57 = sphi 0, %s59
      %s60 = sphi 0, %s57
      %s61 = sphi 0, %s60
      %s77 = sphi 0, %s61
      %s81 = sphi 0, %s81
      %s83 = sphi 0, %s81
      %s84 = sphi 0, %s83
      %s98 = sphi 0, %s84
      %s102 = sphi 0, %s102
      %s104 = sphi 0, %s102
      %s105 = sphi 0, %s104
      %s119 = sphi 0, %s105
      %s123 = sphi 0, %s123
      %s125 = sphi 0, %s123
      %s126 = sphi 0, %s125
      %s140 = sphi 0, %s126
      %s146 = sphi 0, %s148
      %s149 = sphi 0, %s146
      %s150 = sphi 0, %s149
      %s166 = sphi 0, %s150
    $region4: #{tpu_custom_call.1} parent=1 // loop_header_branch
      %24 = sbr.rel (%p22) target = $region8
    $region5: #{tpu_custom_call.1} parent=1 // loop_body
      %s26 = ssub.s32 %s21, 1
      %s27 = ssub.s32 %s21, 2
      %s28 = sadd.s32 %s21, 1
      %s29 = ssub.s32 %s21, %s28
      %p30 = scmp.eq.s32.totalorder %s29, 0
      %s32 = sadd.s32 %s31, 1
      %s33 = scalar_select %p30, %s31, %s32
      %p36 = pneg %p30
      %p37 = scmp.eq.s32.totalorder %s21, 1
      %p38 = por %p36, %p37
      %p39 = scmp.ne.s32.totalorder %s31, %s34
      %p40 = scmp.eq.s32.totalorder %s21, 0
      %p41 = por %p39, %p40
      %p42 = scmp.ne.s32.totalorder %s31, %s34
      %p43 = scmp.eq.s32.totalorder %s26, 1
      %p44 = por %p42, %p43
      %p45 = scmp.ne.s32.totalorder %s34, %s35
      %p46 = scmp.eq.s32.totalorder %s26, 0
      %p47 = por %p45, %p46
      %p48 = scmp.ne.s32.totalorder %s34, %s35
      %p49 = scmp.eq.s32.totalorder %s27, 1
      %p50 = por %p48, %p49
      %p52 = scmp.ne.s32.totalorder %s35, %s51
      %p53 = scmp.eq.s32.totalorder %s27, 0
      %p54 = por %p52, %p53
      %s55 = ssub.s32 %s21, %s28
      %p56 = scmp.eq.s32.totalorder %s55, 0
      %s58 = sadd.s32 %s57, 1
      %s59 = scalar_select %p56, %s57, %s58
      %p62 = pneg %p56
      %p63 = scmp.eq.s32.totalorder %s21, 1
      %p64 = por %p62, %p63
      %p65 = scmp.ne.s32.totalorder %s57, %s60
      %p66 = scmp.eq.s32.totalorder %s21, 0
      %p67 = por %p65, %p66
      %p68 = scmp.ne.s32.totalorder %s57, %s60
      %p69 = scmp.eq.s32.totalorder %s26, 1
      %p70 = por %p68, %p69
      %p71 = scmp.ne.s32.totalorder %s60, %s61
      %p72 = scmp.eq.s32.totalorder %s26, 0
      %p73 = por %p71, %p72
      %p74 = scmp.ne.s32.totalorder %s60, %s61
      %p75 = scmp.eq.s32.totalorder %s27, 1
      %p76 = por %p74, %p75
      %p78 = scmp.ne.s32.totalorder %s61, %s77
      %p79 = scmp.eq.s32.totalorder %s27, 0
      %p80 = por %p78, %p79
      %s82 = sadd.s32 %s81, 1
      %p85 = scmp.eq.s32.totalorder %s21, 1
      %p86 = scmp.ne.s32.totalorder %s81, %s83
      %p87 = scmp.eq.s32.totalorder %s21, 0
      %p88 = por %p86, %p87
      %p89 = scmp.ne.s32.totalorder %s81, %s83
      %p90 = scmp.eq.s32.totalorder %s26, 1
      %p91 = por %p89, %p90
      %p92 = scmp.ne.s32.totalorder %s83, %s84
      %p93 = scmp.eq.s32.totalorder %s26, 0
      %p94 = por %p92, %p93
      %p95 = scmp.ne.s32.totalorder %s83, %s84
      %p96 = scmp.eq.s32.totalorder %s27, 1
      %p97 = por %p95, %p96
      %p99 = scmp.ne.s32.totalorder %s84, %s98
      %p100 = scmp.eq.s32.totalorder %s27, 0
      %p101 = por %p99, %p100
      %s103 = sadd.s32 %s102, 1
      %p106 = scmp.eq.s32.totalorder %s21, 1
      %p107 = scmp.ne.s32.totalorder %s102, %s104
      %p108 = scmp.eq.s32.totalorder %s21, 0
      %p109 = por %p107, %p108
      %p110 = scmp.ne.s32.totalorder %s102, %s104
      %p111 = scmp.eq.s32.totalorder %s26, 1
      %p112 = por %p110, %p111
      %p113 = scmp.ne.s32.totalorder %s104, %s105
      %p114 = scmp.eq.s32.totalorder %s26, 0
      %p115 = por %p113, %p114
      %p116 = scmp.ne.s32.totalorder %s104, %s105
      %p117 = scmp.eq.s32.totalorder %s27, 1
      %p118 = por %p116, %p117
      %p120 = scmp.ne.s32.totalorder %s105, %s119
      %p121 = scmp.eq.s32.totalorder %s27, 0
      %p122 = por %p120, %p121
      %s124 = sadd.s32 %s123, 1
      %p127 = scmp.eq.s32.totalorder %s21, 1
      %p128 = scmp.ne.s32.totalorder %s123, %s125
      %p129 = scmp.eq.s32.totalorder %s21, 0
      %p130 = por %p128, %p129
      %p131 = scmp.ne.s32.totalorder %s123, %s125
      %p132 = scmp.eq.s32.totalorder %s26, 1
      %p133 = por %p131, %p132
      %p134 = scmp.ne.s32.totalorder %s125, %s126
      %p135 = scmp.eq.s32.totalorder %s26, 0
      %p136 = por %p134, %p135
      %p137 = scmp.ne.s32.totalorder %s125, %s126
      %p138 = scmp.eq.s32.totalorder %s27, 1
      %p139 = por %p137, %p138
      %p141 = scmp.ne.s32.totalorder %s126, %s140
      %p142 = scmp.eq.s32.totalorder %s27, 0
      %p143 = por %p141, %p142
      %s144 = ssub.s32 %s21, %s28
      %p145 = scmp.eq.s32.totalorder %s144, 0
      %s147 = sadd.s32 %s146, 1
      %s148 = scalar_select %p145, %s146, %s147
      %p151 = pneg %p145
      %p152 = scmp.eq.s32.totalorder %s21, 1
      %p153 = por %p151, %p152
      %p154 = scmp.ne.s32.totalorder %s146, %s149
      %p155 = scmp.eq.s32.totalorder %s21, 0
      %p156 = por %p154, %p155
      %p157 = scmp.ne.s32.totalorder %s146, %s149
      %p158 = scmp.eq.s32.totalorder %s26, 1
      %p159 = por %p157, %p158
      %p160 = scmp.ne.s32.totalorder %s149, %s150
      %p161 = scmp.eq.s32.totalorder %s26, 0
      %p162 = por %p160, %p161
      %p163 = scmp.ne.s32.totalorder %s149, %s150
      %p164 = scmp.eq.s32.totalorder %s27, 1
      %p165 = por %p163, %p164
      %p167 = scmp.ne.s32.totalorder %s150, %s166
      %p168 = scmp.eq.s32.totalorder %s27, 0
      %p169 = por %p167, %p168
      %p170 = scmp.le.s32.totalorder 1, %s21
      %p171 = scmp.lt.s32.totalorder %s21, 3
      %p172 = pnand %p170, %p171
      %p173 = pneg %p172
      // Predicated region
      $region9: #{tpu_custom_call.1} parent=5 // pred_check
        _
      $region10: #{tpu_custom_call.1} parent=5 // pred_check_branch
        %175 = sbr.rel (%p172) target = $region12
      $region11: #{tpu_custom_call.1} parent=5 // pred_region
        %s176 = ssub.s32 %s21, 1
        // Predicated region
        $region13: #{tpu_custom_call.1} parent=11 // pred_check
          %p177 = pneg %p94
        $region14: #{tpu_custom_call.1} parent=11 // pred_check_branch
          %179 = sbr.rel (%p177) target = $region16
        $region15: #{tpu_custom_call.1} parent=11 // pred_region
          %s181 = ssub.s32 256, 256
          %182 = vsyncadd [#allocation6], %s181
          %s183 = sshll.u32 [#allocation7], 4
          %s184 = int_to_ptr.vmem [resolvable:$true] %s183
          %189 = dma.hbm_to_vmem [thread:$0]  %s2, 256, %s184, [#allocation6], 128, 128, 8
        $region16: #{tpu_custom_call.1} parent=11 // pred_fallthru
          _
        // Predicated region
        $region17: #{tpu_custom_call.1} parent=11 // pred_check
          %p190 = pneg %p115
        $region18: #{tpu_custom_call.1} parent=11 // pred_check_branch
          %192 = sbr.rel (%p190) target = $region20
        $region19: #{tpu_custom_call.1} parent=11 // pred_region
          %s194 = ssub.s32 1024, 1024
          %195 = vsyncadd [#allocation9], %s194
          %s196 = sshll.u32 [#allocation8], 4
          %s197 = int_to_ptr.vmem [resolvable:$true] %s196
          %202 = dma.hbm_to_vmem [thread:$0]  %s3, 1024, %s197, [#allocation9], 128, 128, 8
        $region20: #{tpu_custom_call.1} parent=11 // pred_fallthru
          _
        // Predicated region
        $region21: #{tpu_custom_call.1} parent=11 // pred_check
          %p203 = pneg %p136
        $region22: #{tpu_custom_call.1} parent=11 // pred_check_branch
          %205 = sbr.rel (%p203) target = $region24
        $region23: #{tpu_custom_call.1} parent=11 // pred_region
          %s207 = ssub.s32 1024, 1024
          %208 = vsyncadd [#allocation9], %s207
          %s209 = sshll.u32 [#allocation10], 4
          %s210 = int_to_ptr.vmem [resolvable:$true] %s209
          %215 = dma.hbm_to_vmem [thread:$0]  %s4, 1024, %s210, [#allocation9], 128, 128, 8
        $region24: #{tpu_custom_call.1} parent=11 // pred_fallthru
          _
      $region12: #{tpu_custom_call.1} parent=5 // pred_fallthru
        _
      %p216 = scmp.lt.s32.totalorder %s21, 2
      // Predicated region
      $region25: #{tpu_custom_call.1} parent=5 // pred_check
        %p217 = pneg %p216
      $region26: #{tpu_custom_call.1} parent=5 // pred_check_branch
        %219 = sbr.rel (%p217) target = $region28
      $region27: #{tpu_custom_call.1} parent=5 // pred_region
        // Predicated region
        $region29: #{tpu_custom_call.1} parent=27 // pred_check
          %p220 = pneg %p41
        $region30: #{tpu_custom_call.1} parent=27 // pred_check_branch
          %222 = sbr.rel (%p220) target = $region32
        $region31: #{tpu_custom_call.1} parent=27 // pred_region
          %s223 = sand.u32 %s31, 1
          %s224 = scalar_lea.sflag [#allocation3], %s223
          %s225 = sand.u32 %s31, 1
          %s226 = smul.addr %s225, 16
          %s227 = scalar_lea.vmem [#allocation2], %s226
          %s229 = ssub.s32 256, 256
          %230 = vsyncadd %s224, %s229
          %s231 = smul.addr %s21, 2
          %s232 = smul.addr %s231, 128
          %s233 = scalar_lea.hbm %s0, %s232
          %s234 = sshll.u32 %s227, 4
          %s235 = int_to_ptr.vmem [resolvable:$true] %s234
          %240 = dma.hbm_to_vmem [thread:$0]  %s233, 256, %s235, %s224, 128, 128, 8
        $region32: #{tpu_custom_call.1} parent=27 // pred_fallthru
          _
        // Predicated region
        $region33: #{tpu_custom_call.1} parent=27 // pred_check
          %p241 = pneg %p67
        $region34: #{tpu_custom_call.1} parent=27 // pred_check_branch
          %243 = sbr.rel (%p241) target = $region36
        $region35: #{tpu_custom_call.1} parent=27 // pred_region
          %s244 = sand.u32 %s21, 1
          %s245 = scalar_lea.sflag [#allocation6], %s244
          %s246 = sand.u32 %s57, 1
          %s247 = smul.addr %s246, 16
          %s248 = scalar_lea.vmem [#allocation5], %s247
          %s250 = ssub.s32 256, 256
          %251 = vsyncadd %s245, %s250
          %s252 = smul.addr %s21, 2
          %s253 = smul.addr %s252, 128
          %s254 = scalar_lea.hbm %s1, %s253
          %s255 = sshll.u32 %s248, 4
          %s256 = int_to_ptr.vmem [resolvable:$true] %s255
          %261 = dma.hbm_to_vmem [thread:$0]  %s254, 256, %s256, %s245, 128, 128, 8
        $region36: #{tpu_custom_call.1} parent=27 // pred_fallthru
          _
      $region28: #{tpu_custom_call.1} parent=5 // pred_fallthru
        _
      %p262 = scmp.le.s32.totalorder 1, %s21
      %p263 = scmp.lt.s32.totalorder %s21, 3
      %p264 = pnand %p262, %p263
      %p265 = pneg %p264
      // Predicated region
      $region37: #{tpu_custom_call.1} parent=5 // pred_check
        _
      $region38: #{tpu_custom_call.1} parent=5 // pred_check_branch
        %267 = sbr.rel (%p264) target = $region40
      $region39: #{tpu_custom_call.1} parent=5 // pred_region
        %s268 = ssub.s32 %s21, 1
        %s269 = sand.u32 %s34, 1
        %s270 = scalar_lea.sflag [#allocation3], %s269
        %s271 = sand.u32 %s34, 1
        %s272 = smul.addr %s271, 16
        %s273 = scalar_lea.vmem [#allocation2], %s272
        // Predicated region
        $region41: #{tpu_custom_call.1} parent=39 // pred_check
          %p274 = pneg %p47
        $region42: #{tpu_custom_call.1} parent=39 // pred_check_branch
          %276 = sbr.rel (%p274) target = $region44
        $region43: #{tpu_custom_call.1} parent=39 // pred_region
          %277 = dma.done %s270, 256
        $region44: #{tpu_custom_call.1} parent=39 // pred_fallthru
          _
        %s278 = sand.u32 %s26, 1
        %s279 = scalar_lea.sflag [#allocation6], %s278
        %s280 = sand.u32 %s60, 1
        %s281 = smul.addr %s280, 16
        %s282 = scalar_lea.vmem [#allocation5], %s281
        // Predicated region
        $region45: #{tpu_custom_call.1} parent=39 // pred_check
          %p283 = pneg %p73
        $region46: #{tpu_custom_call.1} parent=39 // pred_check_branch
          %285 = sbr.rel (%p283) target = $region48
        $region47: #{tpu_custom_call.1} parent=39 // pred_region
          %286 = dma.done %s279, 256
        $region48: #{tpu_custom_call.1} parent=39 // pred_fallthru
          _
        // Predicated region
        $region49: #{tpu_custom_call.1} parent=39 // pred_check
          %p287 = pneg %p94
        $region50: #{tpu_custom_call.1} parent=39 // pred_check_branch
          %289 = sbr.rel (%p287) target = $region52
        $region51: #{tpu_custom_call.1} parent=39 // pred_region
          %290 = dma.done [#allocation6], 256
        $region52: #{tpu_custom_call.1} parent=39 // pred_fallthru
          _
        // Predicated region
        $region53: #{tpu_custom_call.1} parent=39 // pred_check
          %p291 = pneg %p115
        $region54: #{tpu_custom_call.1} parent=39 // pred_check_branch
          %293 = sbr.rel (%p291) target = $region56
        $region55: #{tpu_custom_call.1} parent=39 // pred_region
          %294 = dma.done [#allocation9], 1024
        $region56: #{tpu_custom_call.1} parent=39 // pred_fallthru
          _
        // Predicated region
        $region57: #{tpu_custom_call.1} parent=39 // pred_check
          %p295 = pneg %p136
        $region58: #{tpu_custom_call.1} parent=39 // pred_check_branch
          %297 = sbr.rel (%p295) target = $region60
        $region59: #{tpu_custom_call.1} parent=39 // pred_region
          %298 = dma.done [#allocation9], 1024
        $region60: #{tpu_custom_call.1} parent=39 // pred_fallthru
          _
        %s299 = sand.u32 %s34, 1
        %s300 = scalar_lea.sflag [#allocation3], %s299
        %s301 = sand.u32 %s34, 1
        %s302 = smul.addr %s301, 16
        %s303 = scalar_lea.vmem [#allocation2], %s302
        %p304 = pneg %p47
        %p305 = pneg %p44
        %s306 = sand.u32 %s26, 1
        %s307 = scalar_lea.sflag [#allocation6], %s306
        %s308 = sand.u32 %s60, 1
        %s309 = smul.addr %s308, 16
        %s310 = scalar_lea.vmem [#allocation5], %s309
        %p311 = pneg %p73
        %p312 = pneg %p70
        %p313 = pneg %p94
        %p314 = pneg %p91
        %p315 = pneg %p115
        %p316 = pneg %p112
        %p317 = pneg %p136
        %p318 = pneg %p133
        %p319 = pneg %p162
        %p320 = pneg %p159
        %s321 = sand.u32 %s149, 1
        %s322 = scalar_lea.sflag [#allocation4], %s321
        %s323 = sand.u32 %s149, 1
        %s324 = smul.addr %s323, 8
        %s325 = scalar_lea.vmem [#allocation11], %s324
        %v326 = vld [vmem:[%s273] sm:$0xff]
        %v327 = vld [vmem:[%s273 + $0x8] sm:$0xff]
        %v328 = vld [vmem:[%s282] sm:$0xff]
        %v329 = vld [vmem:[%s282 + $0x8] sm:$0xff]
        %v330 = vsub.f32 %v326, %v328
        %v331 = vsub.f32 %v327, %v329
        %v332 = vmul.f32 %v330, %v330
        %v333 = vmul.f32 %v331, %v331
        %vm334 = vcmask 523264
        %v335 = vsel %vm334, %v332, 0.0
        %v336 = vsel %vm334, %v333, 0.0
        %v337 = vadd.f32 %v335, %v336
        %338 = vadd.xlane.f32.xlu0 %v337
        %v339 = vpop.xlane.xlu0 %338
        %v340 = vrot.slane %v339, 4
        %v341 = vadd.f32 %v339, %v340
        %v342 = vrot.slane %v341, 2
        %v343 = vadd.f32 %v341, %v342
        %v344 = vrot.slane %v343, 1
        %v345 = vadd.f32 %v343, %v344
        %s346 = vtos %v345
        %s347 = smul.f32 %s346, 0.00048828125
        %v348 = vld [vmem:[#allocation7] sm:$0xff]
        %v349 = vld [vmem:[#allocation7 + $0x8] sm:$0xff]
        %vm350 = vcmask 130048
        %v352 = vsel %vm350, %v348, 0
        %v355 = vsel %vm350, %v349, 0
        %357 = vmatprep.subr.mxu0 0.0
        %358 = vmatpush1.msra.mxu0 %v330
        %359 = vmatprep.subr.mxu0 0.0
        %360 = vmatpush1.msra.mxu0 %v331
        %361 = vmatprep.subr.mxu0 0.0
        %362 = vmatpush1.msra.mxu0 0.0
        %363 = vmatprep.subr.mxu0 0.0
        %364 = vmatpush1.msra.mxu0 0.0
        %365 = vmatprep.subr.mxu0 0.0
        %366 = vmatpush1.msra.mxu0 0.0
        %367 = vmatprep.subr.mxu0 0.0
        %368 = vmatpush1.msra.mxu0 0.0
        %369 = vmatprep.subr.mxu0 0.0
        %370 = vmatpush1.msra.mxu0 0.0
        %371 = vmatprep.subr.mxu0 0.0
        %372 = vmatpush1.msra.mxu0 0.0
        %373 = vmatprep.subr.mxu0 0.0
        %374 = vmatpush1.msra.mxu0 0.0
        %375 = vmatprep.subr.mxu0 0.0
        %376 = vmatpush1.msra.mxu0 0.0
        %377 = vmatprep.subr.mxu0 0.0
        %378 = vmatpush1.msra.mxu0 0.0
        %379 = vmatprep.subr.mxu0 0.0
        %380 = vmatpush1.msra.mxu0 0.0
        %381 = vmatprep.subr.mxu0 0.0
        %382 = vmatpush1.msra.mxu0 0.0
        %383 = vmatprep.subr.mxu0 0.0
        %384 = vmatpush1.msra.mxu0 0.0
        %385 = vmatprep.subr.mxu0 0.0
        %386 = vmatpush1.msra.mxu0 0.0
        %387 = vmatprep.subr.mxu0 0.0
        %388 = vmatpush1.msra.mxu0 0.0
        %389 = vmatprep.subr.mxu0 0.0
        %390 = vmatpush1.msra.mxu0 0.0
        %391 = vmatprep.subr.mxu0 0.0
        %392 = vmatpush1.msra.mxu0 0.0
        %393 = vmatprep.subr.mxu0 0.0
        %394 = vmatpush1.msra.mxu0 0.0
        %395 = vmatprep.subr.mxu0 0.0
        %396 = vmatpush1.msra.mxu0 0.0
        %397 = vmatprep.subr.mxu0 0.0
        %398 = vmatpush1.msra.mxu0 0.0
        %399 = vmatprep.subr.mxu0 0.0
        %400 = vmatpush1.msra.mxu0 0.0
        %401 = vmatprep.subr.mxu0 0.0
        %402 = vmatpush1.msra.mxu0 0.0
        %403 = vmatprep.subr.mxu0 0.0
        %404 = vmatpush1.msra.mxu0 0.0
        %405 = vmatprep.subr.mxu0 0.0
        %406 = vmatpush1.msra.mxu0 0.0
        %407 = vmatprep.subr.mxu0 0.0
        %408 = vmatpush1.msra.mxu0 0.0
        %409 = vmatprep.subr.mxu0 0.0
        %410 = vmatpush1.msra.mxu0 0.0
        %411 = vmatprep.subr.mxu0 0.0
        %412 = vmatpush1.msra.mxu0 0.0
        %413 = vmatprep.subr.mxu0 0.0
        %414 = vmatpush1.msra.mxu0 0.0
        %415 = vmatprep.subr.mxu0 0.0
        %416 = vmatpush1.msra.mxu0 0.0
        %417 = vmatprep.subr.mxu0 0.0
        %418 = vmatpush1.msra.mxu0 0.0
        %419 = vmatprep.subr.mxu0 0.0
        %420 = vmatpush1.msra.mxu0 0.0
        %421 = vmatprep.mubr.f32.mxu0 0.0
        %422 = vmatmul.mubr.f32.gmra.mrb[0].mxu0 %v352
        %v423 = vpop.f32.mrb[0].mxu0
        %v424 = vadd.f32 0.0, %v423
        %v425 = vpop.f32.mrb[0].mxu0
        %426 = vmatprep.mubr.f32.mxu0 0.0
        %427 = vmatmul.mubr.f32.gmra.mrb[0].mxu0 %v355
        %v428 = vpop.f32.mrb[0].mxu0
        %v429 = vadd.f32 0.0, %v428
        %v430 = vpop.f32.mrb[0].mxu0
        %431 = vdwg.mxu0
        %v432 = vld [vmem:[#allocation8] sm:$0xff]
        %v433 = vld [vmem:[#allocation8 + $0x8] sm:$0xff]
        %v434 = vld [vmem:[#allocation8 + $0x10] sm:$0xff]
        %v435 = vld [vmem:[#allocation8 + $0x18] sm:$0xff]
        %v436 = vld [vmem:[#allocation8 + $0x20] sm:$0xff]
        %v437 = vld [vmem:[#allocation8 + $0x28] sm:$0xff]
        %v438 = vld [vmem:[#allocation8 + $0x30] sm:$0xff]
        %v439 = vld [vmem:[#allocation8 + $0x38] sm:$0xff]
        %v441 = vsel %vm334, %v424, 0
        %443 = vmatprep.subr.mxu0 0.0
        %444 = vmatpush1.msra.mxu0 %v432
        %445 = vmatprep.subr.mxu0 0.0
        %446 = vmatpush1.msra.mxu0 %v433
        %447 = vmatprep.subr.mxu0 0.0
        %448 = vmatpush1.msra.mxu0 %v434
        %449 = vmatprep.subr.mxu0 0.0
        %450 = vmatpush1.msra.mxu0 %v435
        %451 = vmatprep.subr.mxu0 0.0
        %452 = vmatpush1.msra.mxu0 %v436
        %453 = vmatprep.subr.mxu0 0.0
        %454 = vmatpush1.msra.mxu0 %v437
        %455 = vmatprep.subr.mxu0 0.0
        %456 = vmatpush1.msra.mxu0 %v438
        %457 = vmatprep.subr.mxu0 0.0
        %458 = vmatpush1.msra.mxu0 %v439
        %459 = vmatprep.subr.mxu0 0.0
        %460 = vmatpush1.msra.mxu0 0.0
        %461 = vmatprep.subr.mxu0 0.0
        %462 = vmatpush1.msra.mxu0 0.0
        %463 = vmatprep.subr.mxu0 0.0
        %464 = vmatpush1.msra.mxu0 0.0
        %465 = vmatprep.subr.mxu0 0.0
        %466 = vmatpush1.msra.mxu0 0.0
        %467 = vmatprep.subr.mxu0 0.0
        %468 = vmatpush1.msra.mxu0 0.0
        %469 = vmatprep.subr.mxu0 0.0
        %470 = vmatpush1.msra.mxu0 0.0
        %471 = vmatprep.subr.mxu0 0.0
        %472 = vmatpush1.msra.mxu0 0.0
        %473 = vmatprep.subr.mxu0 0.0
        %474 = vmatpush1.msra.mxu0 0.0
        %475 = vmatprep.subr.mxu0 0.0
        %476 = vmatpush1.msra.mxu0 0.0
        %477 = vmatprep.subr.mxu0 0.0
        %478 = vmatpush1.msra.mxu0 0.0
        %479 = vmatprep.subr.mxu0 0.0
        %480 = vmatpush1.msra.mxu0 0.0
        %481 = vmatprep.subr.mxu0 0.0
        %482 = vmatpush1.msra.mxu0 0.0
        %483 = vmatprep.subr.mxu0 0.0
        %484 = vmatpush1.msra.mxu0 0.0
        %485 = vmatprep.subr.mxu0 0.0
        %486 = vmatpush1.msra.mxu0 0.0
        %487 = vmatprep.subr.mxu0 0.0
        %488 = vmatpush1.msra.mxu0 0.0
        %489 = vmatprep.subr.mxu0 0.0
        %490 = vmatpush1.msra.mxu0 0.0
        %491 = vmatprep.subr.mxu0 0.0
        %492 = vmatpush1.msra.mxu0 0.0
        %493 = vmatprep.subr.mxu0 0.0
        %494 = vmatpush1.msra.mxu0 0.0
        %495 = vmatprep.subr.mxu0 0.0
        %496 = vmatpush1.msra.mxu0 0.0
        %497 = vmatprep.subr.mxu0 0.0
        %498 = vmatpush1.msra.mxu0 0.0
        %499 = vmatprep.subr.mxu0 0.0
        %500 = vmatpush1.msra.mxu0 0.0
        %501 = vmatprep.subr.mxu0 0.0
        %502 = vmatpush1.msra.mxu0 0.0
        %503 = vmatprep.subr.mxu0 0.0
        %504 = vmatpush1.msra.mxu0 0.0
        %505 = vmatprep.subr.mxu0 0.0
        %506 = vmatpush1.msra.mxu0 0.0
        %507 = vmatprep.mubr.f32.mxu0 0.0
        %508 = vmatmul.mubr.f32.gmra.mrb[0].mxu0 %v441
        %v509 = vpop.f32.mrb[0].mxu0
        %v510 = vadd.f32 0.0, %v509
        %v511 = vpop.f32.mrb[0].mxu0
        %512 = vdwg.mxu0
        %v513 = vmul.f32 %v510, %v510
        %514 = vadd.xlane.f32.xlu0 %v513
        %v515 = vpop.xlane.xlu0 %514
        %v516 = vrot.slane %v515, 4
        %v517 = vadd.f32 %v515, %v516
        %v518 = vrot.slane %v517, 2
        %v519 = vadd.f32 %v517, %v518
        %v520 = vrot.slane %v519, 1
        %v521 = vadd.f32 %v519, %v520
        %s522 = vtos %v521
        %s523 = smul.f32 %s522, 0.001953125
        %s524 = sadd.f32 %s347, %s523
        %v525 = vld [vmem:[#allocation10] sm:$0xff]
        %v526 = vld [vmem:[#allocation10 + $0x8] sm:$0xff]
        %v527 = vld [vmem:[#allocation10 + $0x10] sm:$0xff]
        %v528 = vld [vmem:[#allocation10 + $0x18] sm:$0xff]
        %v529 = vld [vmem:[#allocation10 + $0x20] sm:$0xff]
        %v530 = vld [vmem:[#allocation10 + $0x28] sm:$0xff]
        %v531 = vld [vmem:[#allocation10 + $0x30] sm:$0xff]
        %v532 = vld [vmem:[#allocation10 + $0x38] sm:$0xff]
        %v534 = vsel %vm334, %v429, 0
        %536 = vmatprep.subr.mxu0 0.0
        %537 = vmatpush1.msra.mxu0 %v525
        %538 = vmatprep.subr.mxu0 0.0
        %539 = vmatpush1.msra.mxu0 %v526
        %540 = vmatprep.subr.mxu0 0.0
        %541 = vmatpush1.msra.mxu0 %v527
        %542 = vmatprep.subr.mxu0 0.0
        %543 = vmatpush1.msra.mxu0 %v528
        %544 = vmatprep.subr.mxu0 0.0
        %545 = vmatpush1.msra.mxu0 %v529
        %546 = vmatprep.subr.mxu0 0.0
        %547 = vmatpush1.msra.mxu0 %v530
        %548 = vmatprep.subr.mxu0 0.0
        %549 = vmatpush1.msra.mxu0 %v531
        %550 = vmatprep.subr.mxu0 0.0
        %551 = vmatpush1.msra.mxu0 %v532
        %552 = vmatprep.subr.mxu0 0.0
        %553 = vmatpush1.msra.mxu0 0.0
        %554 = vmatprep.subr.mxu0 0.0
        %555 = vmatpush1.msra.mxu0 0.0
        %556 = vmatprep.subr.mxu0 0.0
        %557 = vmatpush1.msra.mxu0 0.0
        %558 = vmatprep.subr.mxu0 0.0
        %559 = vmatpush1.msra.mxu0 0.0
        %560 = vmatprep.subr.mxu0 0.0
        %561 = vmatpush1.msra.mxu0 0.0
        %562 = vmatprep.subr.mxu0 0.0
        %563 = vmatpush1.msra.mxu0 0.0
        %564 = vmatprep.subr.mxu0 0.0
        %565 = vmatpush1.msra.mxu0 0.0
        %566 = vmatprep.subr.mxu0 0.0
        %567 = vmatpush1.msra.mxu0 0.0
        %568 = vmatprep.subr.mxu0 0.0
        %569 = vmatpush1.msra.mxu0 0.0
        %570 = vmatprep.subr.mxu0 0.0
        %571 = vmatpush1.msra.mxu0 0.0
        %572 = vmatprep.subr.mxu0 0.0
        %573 = vmatpush1.msra.mxu0 0.0
        %574 = vmatprep.subr.mxu0 0.0
        %575 = vmatpush1.msra.mxu0 0.0
        %576 = vmatprep.subr.mxu0 0.0
        %577 = vmatpush1.msra.mxu0 0.0
        %578 = vmatprep.subr.mxu0 0.0
        %579 = vmatpush1.msra.mxu0 0.0
        %580 = vmatprep.subr.mxu0 0.0
        %581 = vmatpush1.msra.mxu0 0.0
        %582 = vmatprep.subr.mxu0 0.0
        %583 = vmatpush1.msra.mxu0 0.0
        %584 = vmatprep.subr.mxu0 0.0
        %585 = vmatpush1.msra.mxu0 0.0
        %586 = vmatprep.subr.mxu0 0.0
        %587 = vmatpush1.msra.mxu0 0.0
        %588 = vmatprep.subr.mxu0 0.0
        %589 = vmatpush1.msra.mxu0 0.0
        %590 = vmatprep.subr.mxu0 0.0
        %591 = vmatpush1.msra.mxu0 0.0
        %592 = vmatprep.subr.mxu0 0.0
        %593 = vmatpush1.msra.mxu0 0.0
        %594 = vmatprep.subr.mxu0 0.0
        %595 = vmatpush1.msra.mxu0 0.0
        %596 = vmatprep.subr.mxu0 0.0
        %597 = vmatpush1.msra.mxu0 0.0
        %598 = vmatprep.subr.mxu0 0.0
        %599 = vmatpush1.msra.mxu0 0.0
        %600 = vmatprep.mubr.f32.mxu0 0.0
        %601 = vmatmul.mubr.f32.gmra.mrb[0].mxu0 %v534
        %v602 = vpop.f32.mrb[0].mxu0
        %v603 = vadd.f32 0.0, %v602
        %v604 = vpop.f32.mrb[0].mxu0
        %605 = vdwg.mxu0
        %v606 = vmul.f32 %v603, %v603
        %607 = vadd.xlane.f32.xlu0 %v606
        %v608 = vpop.xlane.xlu0 %607
        %v609 = vrot.slane %v608, 4
        %v610 = vadd.f32 %v608, %v609
        %v611 = vrot.slane %v610, 2
        %v612 = vadd.f32 %v610, %v611
        %v613 = vrot.slane %v612, 1
        %v614 = vadd.f32 %v612, %v613
        %s615 = vtos %v614
        %s616 = smul.f32 %s615, 0.0078125
        %s617 = sadd.f32 %s524, %s616
        %v618 = vstv %s617
        %619 = vst [vmem:[%s325] sm:$0xff] %v618
        %s620 = sand.u32 %s149, 1
        %s621 = scalar_lea.sflag [#allocation4], %s620
        %s622 = sand.u32 %s149, 1
        %s623 = smul.addr %s622, 8
        %s624 = scalar_lea.vmem [#allocation11], %s623
        // Predicated region
        $region61: #{tpu_custom_call.1} parent=39 // pred_check
          %p625 = pneg %p159
        $region62: #{tpu_custom_call.1} parent=39 // pred_check_branch
          %627 = sbr.rel (%p625) target = $region64
        $region63: #{tpu_custom_call.1} parent=39 // pred_region
          %s629 = ssub.s32 128, 128
          %630 = vsyncadd %s621, %s629
          %s631 = smul.addr %s26, 128
          %s632 = scalar_lea.hbm %s5, %s631
          %s634 = sshll.u32 %s624, 4
          %s635 = int_to_ptr.vmem [resolvable:$true] %s634
          %637 = dma.vmem_to_hbm [thread:$0]  %s635, 128, %s632, %s621
        $region64: #{tpu_custom_call.1} parent=39 // pred_fallthru
          _
      $region40: #{tpu_custom_call.1} parent=5 // pred_fallthru
        _
      %p638 = scmp.le.s32.totalorder 2, %s21
      // Predicated region
      $region65: #{tpu_custom_call.1} parent=5 // pred_check
        %p639 = pneg %p638
      $region66: #{tpu_custom_call.1} parent=5 // pred_check_branch
        %641 = sbr.rel (%p639) target = $region68
      $region67: #{tpu_custom_call.1} parent=5 // pred_region
        %s642 = ssub.s32 %s21, 2
        // Predicated region
        $region69: #{tpu_custom_call.1} parent=67 // pred_check
          %p643 = pneg %p165
        $region70: #{tpu_custom_call.1} parent=67 // pred_check_branch
          %645 = sbr.rel (%p643) target = $region72
        $region71: #{tpu_custom_call.1} parent=67 // pred_region
          %s646 = sand.u32 %s150, 1
          %s647 = scalar_lea.sflag [#allocation4], %s646
          %s648 = sand.u32 %s150, 1
          %s649 = smul.addr %s648, 8
          %s650 = scalar_lea.vmem [#allocation11], %s649
          %651 = dma.done %s647, 128
        $region72: #{tpu_custom_call.1} parent=67 // pred_fallthru
          _
      $region68: #{tpu_custom_call.1} parent=5 // pred_fallthru
        _
    $region6: #{tpu_custom_call.1} parent=1 // loop_footer
      %s25 = sadd.s32 1, %s21
    $region7: #{tpu_custom_call.1} parent=1 // loop_footer_branch
      %20 = sbr.rel target = $region3
    $region8: #{tpu_custom_call.1} parent=1 // loop_exit
      _
    %652 = vsyncpa [#allocation3], 1
    %s653 = scalar_lea.sflag [#allocation3], 1
    %654 = vsyncpa %s653, 1
    %655 = vsyncpa [#allocation6], 1
    %s656 = scalar_lea.sflag [#allocation6], 1
    %657 = vsyncpa %s656, 1
    %658 = vsyncpa [#allocation9], 1
    %659 = vsyncpa [#allocation4], 1
    %s660 = scalar_lea.sflag [#allocation4], 1
    %661 = vsyncpa %s660, 1

</llo_original>
